<compile_context>
chip_gen: v7x
topology: tpu7x:2x2x1
jax: 0.10.0
libtpu: 0.0.40
codegen_flags: <defaults>
</compile_context>

<pallas_src>
import jax
import jax.numpy as jnp
from jax.experimental import pallas as pl
from jax.experimental.pallas import tpu as pltpu


INPUT_SIZE = 20
HIDDEN_SIZE = 128
BN_EPS = 1e-5
MAX_TILE_B = 1024


def _focused_attention_kernel(
    x_ref,
    # attention branch (bf16 weights, f32 biases)
    aw1_ref, ab1_ref, aw2_ref, ab2_ref,
    # main net: 3 x (Linear with BN folded in)  -> bf16 weights, f32 biases
    w1_ref, b1_ref, w2_ref, b2_ref, w3_ref, b3_ref,
    # final linear: (1, 64) row + (1, 1) bias, f32 (VPU path)
    w4_ref, b4_ref,
    out_ref,
):
    x = x_ref[...]                                     # (tile_b, 20) f32

    # ---- attention branch: Linear -> tanh -> Linear -> softmax(dim=1) ----
    h = jnp.tanh(
        jnp.dot(x.astype(jnp.bfloat16), aw1_ref[...],
                preferred_element_type=jnp.float32) + ab1_ref[...]
    )
    logits = (
        jnp.dot(h.astype(jnp.bfloat16), aw2_ref[...],
                preferred_element_type=jnp.float32) + ab2_ref[...]
    )
    logits = logits - jnp.max(logits, axis=1, keepdims=True)
    e = jnp.exp(logits)
    attn = e * pl.reciprocal(jnp.sum(e, axis=1, keepdims=True), approx=True)

    # ---- attended features ----
    y = (x * attn).astype(jnp.bfloat16)

    # ---- main net: (Linear[BN folded] -> ReLU -> Dropout(id)) x 3 ----
    y = jnp.maximum(
        jnp.dot(y, w1_ref[...], preferred_element_type=jnp.float32) + b1_ref[...],
        0.0)
    y = jnp.maximum(
        jnp.dot(y.astype(jnp.bfloat16), w2_ref[...],
                preferred_element_type=jnp.float32) + b2_ref[...],
        0.0)
    y = jnp.maximum(
        jnp.dot(y.astype(jnp.bfloat16), w3_ref[...],
                preferred_element_type=jnp.float32) + b3_ref[...],
        0.0)

    # ---- final Linear(64 -> 1): VPU multiply + lane reduce (no 1-col MXU dot) ----
    out_ref[...] = jnp.sum(y * w4_ref[...], axis=1, keepdims=True) + b4_ref[...]


def _round_up(n, m):
    return ((n + m - 1) // m) * m


@jax.jit
def focused_attention_net(x, params):
    """x: (B, 20) float32.  params: flat list of the 24 original 2-D arrays."""
    (aw1, ab1, aw2, ab2,
     w1, b1, g1, be1, m1, v1,
     w2, b2, g2, be2, m2, v2,
     w3, b3, g3, be3, m3, v3,
     w4, b4) = params

    # ---- host-side BatchNorm folding (eval mode) ----
    def fold(w, b, g, be, m, v):
        scale = g * jax.lax.rsqrt(v + BN_EPS)              # (1, out)
        w_f = (w * scale).astype(jnp.bfloat16)             # (in, out)
        b_f = (b - m) * scale + be                         # (1, out)
        return w_f, b_f

    w1f, b1f = fold(w1, b1, g1, be1, m1, v1)
    w2f, b2f = fold(w2, b2, g2, be2, m2, v2)
    w3f, b3f = fold(w3, b3, g3, be3, m3, v3)

    aw1_b = aw1.astype(jnp.bfloat16)
    aw2_b = aw2.astype(jnp.bfloat16)
    w4_row = w4.T.astype(jnp.float32)                      # (1, 64)
    b4_f = b4.astype(jnp.float32)                          # (1, 1)

    # ---- batch tiling (pad so every tile is full) ----
    B = x.shape[0]
    tile_b = min(MAX_TILE_B, _round_up(B, 8))
    B_pad = _round_up(B, tile_b)
    x_p = jnp.pad(x, ((0, B_pad - B), (0, 0)))

    params_kernel = [aw1_b, ab1, aw2_b, ab2,
                     w1f, b1f, w2f, b2f, w3f, b3f,
                     w4_row, b4_f]

    def const_spec(p):
        return pl.BlockSpec(p.shape, lambda i: (0, 0))

    grid = (B_pad // tile_b,)
    out = pl.pallas_call(
        _focused_attention_kernel,
        out_shape=jax.ShapeDtypeStruct((B_pad, 1), jnp.float32),
        grid=grid,
        in_specs=[pl.BlockSpec((tile_b, INPUT_SIZE), lambda i: (i, 0))]
                 + [const_spec(p) for p in params_kernel],
        out_specs=pl.BlockSpec((tile_b, 1), lambda i: (i, 0)),
        compiler_params=pltpu.CompilerParams(
            dimension_semantics=("parallel",),
            vmem_limit_bytes=32 * 1024 * 1024,
        ),
    )(x_p, *params_kernel)

    # nn.Module does .squeeze() on the (B, 1) result; drop padded rows
    return out[:B, 0]


def init_params(key, input_size=INPUT_SIZE, hidden_size=HIDDEN_SIZE):
    """Deterministic synthetic parameters (shapes match the PyTorch module)."""
    keys = jax.random.split(key, 16)

    def lin(kw, kb, fan_in, fan_out):
        scale = 1.0 / jnp.sqrt(jnp.float32(fan_in))
        w = jax.random.uniform(kw, (fan_in, fan_out), jnp.float32, -scale, scale)
        b = jax.random.uniform(kb, (1, fan_out), jnp.float32, -scale, scale)
        return w, b

    def bn(n, seed):
        k = jax.random.PRNGKey(seed)
        kg, kb, km, kv = jax.random.split(k, 4)
        gamma = 1.0 + 0.1 * jax.random.normal(kg, (1, n), jnp.float32)
        beta = 0.1 * jax.random.normal(kb, (1, n), jnp.float32)
        mean = 0.1 * jax.random.normal(km, (1, n), jnp.float32)
        var = jnp.abs(1.0 + 0.1 * jax.random.normal(kv, (1, n), jnp.float32))
        return gamma, beta, mean, var

    # attention branch
    aw1, ab1 = lin(keys[0], keys[1], input_size, hidden_size)
    aw2, ab2 = lin(keys[2], keys[3], hidden_size, input_size)
    # main net
    w1, b1 = lin(keys[4], keys[5], input_size, 256)
    g1, be1, m1, v1 = bn(256, 101)
    w2, b2 = lin(keys[6], keys[7], 256, 128)
    g2, be2, m2, v2 = bn(128, 102)
    w3, b3 = lin(keys[8], keys[9], 128, 64)
    g3, be3, m3, v3 = bn(64, 103)
    w4, b4 = lin(keys[10], keys[11], 64, 1)

    return [
        aw1, ab1, aw2, ab2,
        w1, b1, g1, be1, m1, v1,
        w2, b2, g2, be2, m2, v2,
        w3, b3, g3, be3, m3, v3,
        w4, b4,
    ]


def _reference(x, params):
    """Pure-JAX f32 reference of the same forward pass (for a sanity check)."""
    (aw1, ab1, aw2, ab2,
     w1, b1, g1, be1, m1, v1,
     w2, b2, g2, be2, m2, v2,
     w3, b3, g3, be3, m3, v3,
     w4, b4) = params
    h = jnp.tanh(x @ aw1 + ab1)
    attn = jax.nn.softmax(h @ aw2 + ab2, axis=1)
    y = x * attn

    def blk(y, w, b, g, be, m, v):
        z = y @ w + b
        z = (z - m) / jnp.sqrt(v + BN_EPS) * g + be
        return jnp.maximum(z, 0.0)

    y = blk(y, w1, b1, g1, be1, m1, v1)
    y = blk(y, w2, b2, g2, be2, m2, v2)
    y = blk(y, w3, b3, g3, be3, m3, v3)
    return (y @ w4 + b4)[:, 0]


if __name__ == "__main__":
    key = jax.random.PRNGKey(0)
    k_x, k_p = jax.random.split(key)

    batch = 8
    x = jax.random.normal(k_x, (batch, INPUT_SIZE), jnp.float32)
    params = init_params(k_p)

    out = focused_attention_net(x, params)
    out = jax.block_until_ready(out)

    ref = _reference(x, params)
    assert out.shape == (batch,), out.shape
    # bf16 matmul operands (f32 accumulate) -> slightly looser tolerance
    assert jnp.allclose(out, ref, atol=2e-2, rtol=2e-2), (out, ref)

    print("KERNEL_OK")
</pallas_src>

<mosaic_0001>
module attributes {stable_mosaic.version = 11 : i64} {
  func.func @_focused_attention_kernel(%arg0: i32, %arg1: memref<8x20xf32, #tpu.memory_space<vmem>>, %arg2: memref<20x128xbf16, #tpu.memory_space<vmem>>, %arg3: memref<1x128xf32, #tpu.memory_space<vmem>>, %arg4: memref<128x20xbf16, #tpu.memory_space<vmem>>, %arg5: memref<1x20xf32, #tpu.memory_space<vmem>>, %arg6: memref<20x256xbf16, #tpu.memory_space<vmem>>, %arg7: memref<1x256xf32, #tpu.memory_space<vmem>>, %arg8: memref<256x128xbf16, #tpu.memory_space<vmem>>, %arg9: memref<1x128xf32, #tpu.memory_space<vmem>>, %arg10: memref<128x64xbf16, #tpu.memory_space<vmem>>, %arg11: memref<1x64xf32, #tpu.memory_space<vmem>>, %arg12: memref<1x64xf32, #tpu.memory_space<vmem>>, %arg13: memref<1x1xf32, #tpu.memory_space<vmem>>, %arg14: memref<8x1xf32, #tpu.memory_space<vmem>>) attributes {dimension_semantics = [#tpu.dimension_semantics<parallel>], iteration_bounds = array<i64: 1>, scalar_prefetch = 0 : i64, scratch_operands = 0 : i64, tpu.core_type = #tpu.core_type<tc>, window_params = [{transform_indices = @transform_0, window_bounds = array<i64: 8, 20>}, {pipeline_mode = #tpu.pipeline_mode<synchronous>, transform_indices = @transform_1, window_bounds = array<i64: 20, 128>}, {pipeline_mode = #tpu.pipeline_mode<synchronous>, transform_indices = @transform_2, window_bounds = array<i64: 1, 128>}, {pipeline_mode = #tpu.pipeline_mode<synchronous>, transform_indices = @transform_3, window_bounds = array<i64: 128, 20>}, {pipeline_mode = #tpu.pipeline_mode<synchronous>, transform_indices = @transform_4, window_bounds = array<i64: 1, 20>}, {pipeline_mode = #tpu.pipeline_mode<synchronous>, transform_indices = @transform_5, window_bounds = array<i64: 20, 256>}, {pipeline_mode = #tpu.pipeline_mode<synchronous>, transform_indices = @transform_6, window_bounds = array<i64: 1, 256>}, {pipeline_mode = #tpu.pipeline_mode<synchronous>, transform_indices = @transform_7, window_bounds = array<i64: 256, 128>}, {pipeline_mode = #tpu.pipeline_mode<synchronous>, transform_indices = @transform_8, window_bounds = array<i64: 1, 128>}, {pipeline_mode = #tpu.pipeline_mode<synchronous>, transform_indices = @transform_9, window_bounds = array<i64: 128, 64>}, {pipeline_mode = #tpu.pipeline_mode<synchronous>, transform_indices = @transform_10, window_bounds = array<i64: 1, 64>}, {pipeline_mode = #tpu.pipeline_mode<synchronous>, transform_indices = @transform_11, window_bounds = array<i64: 1, 64>}, {pipeline_mode = #tpu.pipeline_mode<synchronous>, transform_indices = @transform_12, window_bounds = array<i64: 1, 1>}, {transform_indices = @transform_13, window_bounds = array<i64: 8, 1>}]} {
    %c0 = arith.constant 0 : index
    %c0_0 = arith.constant 0 : index
    %0 = vector.load %arg1[%c0, %c0_0] : memref<8x20xf32, #tpu.memory_space<vmem>>, vector<8x20xf32>
    %1 = arith.truncf %0 : vector<8x20xf32> to vector<8x20xbf16>
    %c0_1 = arith.constant 0 : index
    %c0_2 = arith.constant 0 : index
    %2 = vector.load %arg2[%c0_1, %c0_2] : memref<20x128xbf16, #tpu.memory_space<vmem>>, vector<20x128xbf16>
    %cst = arith.constant dense<0.000000e+00> : vector<8x128xf32>
    %3 = tpu.matmul %1, %2, %cst {dimension_numbers = #tpu.dot_dimension_numbers<[1], [0], [0], [1], [0, 0, 1, 1], [], []>} : vector<8x20xbf16>, vector<20x128xbf16>, vector<8x128xf32> -> vector<8x128xf32>
    %c0_3 = arith.constant 0 : index
    %c0_4 = arith.constant 0 : index
    %4 = vector.load %arg3[%c0_3, %c0_4] : memref<1x128xf32, #tpu.memory_space<vmem>>, vector<1x128xf32>
    %5 = vector.broadcast %4 : vector<1x128xf32> to vector<8x128xf32>
    %6 = arith.addf %3, %5 : vector<8x128xf32>
    %7 = math.tanh %6 : vector<8x128xf32>
    %8 = arith.truncf %7 : vector<8x128xf32> to vector<8x128xbf16>
    %c0_5 = arith.constant 0 : index
    %c0_6 = arith.constant 0 : index
    %9 = vector.load %arg4[%c0_5, %c0_6] : memref<128x20xbf16, #tpu.memory_space<vmem>>, vector<128x20xbf16>
    %cst_7 = arith.constant dense<0.000000e+00> : vector<8x20xf32>
    %10 = tpu.matmul %8, %9, %cst_7 {dimension_numbers = #tpu.dot_dimension_numbers<[1], [0], [0], [1], [0, 0, 1, 1], [], []>} : vector<8x128xbf16>, vector<128x20xbf16>, vector<8x20xf32> -> vector<8x20xf32>
    %c0_8 = arith.constant 0 : index
    %c0_9 = arith.constant 0 : index
    %11 = vector.load %arg5[%c0_8, %c0_9] : memref<1x20xf32, #tpu.memory_space<vmem>>, vector<1x20xf32>
    %12 = vector.broadcast %11 : vector<1x20xf32> to vector<8x20xf32>
    %13 = arith.addf %10, %12 : vector<8x20xf32>
    %cst_10 = arith.constant dense<0xFF800000> : vector<8xf32>
    %14 = vector.multi_reduction <maximumf>, %13, %cst_10 [1] : vector<8x20xf32> to vector<8xf32>
    %15 = vector.shape_cast %14 : vector<8xf32> to vector<8x1xf32>
    %16 = vector.broadcast %15 : vector<8x1xf32> to vector<8x20xf32>
    %17 = arith.subf %13, %16 : vector<8x20xf32>
    %18 = math.exp %17 : vector<8x20xf32>
    %cst_11 = arith.constant dense<0.000000e+00> : vector<8xf32>
    %19 = vector.multi_reduction <add>, %18, %cst_11 [1] : vector<8x20xf32> to vector<8xf32>
    %20 = vector.shape_cast %19 : vector<8xf32> to vector<8x1xf32>
    %21 = tpu.reciprocal %20 {approx = true} : vector<8x1xf32> -> vector<8x1xf32>
    %22 = vector.broadcast %21 : vector<8x1xf32> to vector<8x20xf32>
    %23 = arith.mulf %18, %22 : vector<8x20xf32>
    %24 = arith.mulf %0, %23 : vector<8x20xf32>
    %25 = arith.truncf %24 : vector<8x20xf32> to vector<8x20xbf16>
    %c0_12 = arith.constant 0 : index
    %c0_13 = arith.constant 0 : index
    %26 = vector.load %arg6[%c0_12, %c0_13] : memref<20x256xbf16, #tpu.memory_space<vmem>>, vector<20x256xbf16>
    %cst_14 = arith.constant dense<0.000000e+00> : vector<8x256xf32>
    %27 = tpu.matmul %25, %26, %cst_14 {dimension_numbers = #tpu.dot_dimension_numbers<[1], [0], [0], [1], [0, 0, 1, 1], [], []>} : vector<8x20xbf16>, vector<20x256xbf16>, vector<8x256xf32> -> vector<8x256xf32>
    %c0_15 = arith.constant 0 : index
    %c0_16 = arith.constant 0 : index
    %28 = vector.load %arg7[%c0_15, %c0_16] : memref<1x256xf32, #tpu.memory_space<vmem>>, vector<1x256xf32>
    %29 = vector.broadcast %28 : vector<1x256xf32> to vector<8x256xf32>
    %30 = arith.addf %27, %29 : vector<8x256xf32>
    %cst_17 = arith.constant 0.000000e+00 : f32
    %31 = vector.broadcast %cst_17 : f32 to vector<8x256xf32>
    %32 = arith.maximumf %30, %31 : vector<8x256xf32>
    %33 = arith.truncf %32 : vector<8x256xf32> to vector<8x256xbf16>
    %c0_18 = arith.constant 0 : index
    %c0_19 = arith.constant 0 : index
    %34 = vector.load %arg8[%c0_18, %c0_19] : memref<256x128xbf16, #tpu.memory_space<vmem>>, vector<256x128xbf16>
    %cst_20 = arith.constant dense<0.000000e+00> : vector<8x128xf32>
    %35 = tpu.matmul %33, %34, %cst_20 {dimension_numbers = #tpu.dot_dimension_numbers<[1], [0], [0], [1], [0, 0, 1, 1], [], []>} : vector<8x256xbf16>, vector<256x128xbf16>, vector<8x128xf32> -> vector<8x128xf32>
    %c0_21 = arith.constant 0 : index
    %c0_22 = arith.constant 0 : index
    %36 = vector.load %arg9[%c0_21, %c0_22] : memref<1x128xf32, #tpu.memory_space<vmem>>, vector<1x128xf32>
    %37 = vector.broadcast %36 : vector<1x128xf32> to vector<8x128xf32>
    %38 = arith.addf %35, %37 : vector<8x128xf32>
    %cst_23 = arith.constant 0.000000e+00 : f32
    %39 = vector.broadcast %cst_23 : f32 to vector<8x128xf32>
    %40 = arith.maximumf %38, %39 : vector<8x128xf32>
    %41 = arith.truncf %40 : vector<8x128xf32> to vector<8x128xbf16>
    %c0_24 = arith.constant 0 : index
    %c0_25 = arith.constant 0 : index
    %42 = vector.load %arg10[%c0_24, %c0_25] : memref<128x64xbf16, #tpu.memory_space<vmem>>, vector<128x64xbf16>
    %cst_26 = arith.constant dense<0.000000e+00> : vector<8x64xf32>
    %43 = tpu.matmul %41, %42, %cst_26 {dimension_numbers = #tpu.dot_dimension_numbers<[1], [0], [0], [1], [0, 0, 1, 1], [], []>} : vector<8x128xbf16>, vector<128x64xbf16>, vector<8x64xf32> -> vector<8x64xf32>
    %c0_27 = arith.constant 0 : index
    %c0_28 = arith.constant 0 : index
    %44 = vector.load %arg11[%c0_27, %c0_28] : memref<1x64xf32, #tpu.memory_space<vmem>>, vector<1x64xf32>
    %45 = vector.broadcast %44 : vector<1x64xf32> to vector<8x64xf32>
    %46 = arith.addf %43, %45 : vector<8x64xf32>
    %cst_29 = arith.constant 0.000000e+00 : f32
    %47 = vector.broadcast %cst_29 : f32 to vector<8x64xf32>
    %48 = arith.maximumf %46, %47 : vector<8x64xf32>
    %c0_30 = arith.constant 0 : index
    %c0_31 = arith.constant 0 : index
    %49 = vector.load %arg12[%c0_30, %c0_31] : memref<1x64xf32, #tpu.memory_space<vmem>>, vector<1x64xf32>
    %50 = vector.broadcast %49 : vector<1x64xf32> to vector<8x64xf32>
    %51 = arith.mulf %48, %50 : vector<8x64xf32>
    %cst_32 = arith.constant dense<0.000000e+00> : vector<8xf32>
    %52 = vector.multi_reduction <add>, %51, %cst_32 [1] : vector<8x64xf32> to vector<8xf32>
    %53 = vector.shape_cast %52 : vector<8xf32> to vector<8x1xf32>
    %c0_33 = arith.constant 0 : index
    %c0_34 = arith.constant 0 : index
    %54 = vector.load %arg13[%c0_33, %c0_34] : memref<1x1xf32, #tpu.memory_space<vmem>>, vector<1x1xf32>
    %55 = vector.broadcast %54 : vector<1x1xf32> to vector<8x1xf32>
    %56 = arith.addf %53, %55 : vector<8x1xf32>
    %c0_35 = arith.constant 0 : index
    %c0_36 = arith.constant 0 : index
    %57 = vector.load %arg14[%c0_35, %c0_36] : memref<8x1xf32, #tpu.memory_space<vmem>>, vector<8x1xf32>
    tpu.vector_store %arg14[%c0_35, %c0_36], %56 {strides = array<i32>} : memref<8x1xf32, #tpu.memory_space<vmem>>, vector<8x1xf32>,
    return
  }
  func.func @transform_0(%arg0: i32) -> (i32, i32) {
    %c0_i32 = arith.constant 0 : i32
    %c0_i32_0 = arith.constant 0 : i32
    return %arg0, %c0_i32 : i32, i32
  }
  func.func @transform_1(%arg0: i32) -> (i32, i32) {
    %c0_i32 = arith.constant 0 : i32
    %c0_i32_0 = arith.constant 0 : i32
    %c0_i32_1 = arith.constant 0 : i32
    return %c0_i32, %c0_i32_0 : i32, i32
  }
  func.func @transform_2(%arg0: i32) -> (i32, i32) {
    %c0_i32 = arith.constant 0 : i32
    %c0_i32_0 = arith.constant 0 : i32
    %c0_i32_1 = arith.constant 0 : i32
    return %c0_i32, %c0_i32_0 : i32, i32
  }
  func.func @transform_3(%arg0: i32) -> (i32, i32) {
    %c0_i32 = arith.constant 0 : i32
    %c0_i32_0 = arith.constant 0 : i32
    %c0_i32_1 = arith.constant 0 : i32
    return %c0_i32, %c0_i32_0 : i32, i32
  }
  func.func @transform_4(%arg0: i32) -> (i32, i32) {
    %c0_i32 = arith.constant 0 : i32
    %c0_i32_0 = arith.constant 0 : i32
    %c0_i32_1 = arith.constant 0 : i32
    return %c0_i32, %c0_i32_0 : i32, i32
  }
  func.func @transform_5(%arg0: i32) -> (i32, i32) {
    %c0_i32 = arith.constant 0 : i32
    %c0_i32_0 = arith.constant 0 : i32
    %c0_i32_1 = arith.constant 0 : i32
    return %c0_i32, %c0_i32_0 : i32, i32
  }
  func.func @transform_6(%arg0: i32) -> (i32, i32) {
    %c0_i32 = arith.constant 0 : i32
    %c0_i32_0 = arith.constant 0 : i32
    %c0_i32_1 = arith.constant 0 : i32
    return %c0_i32, %c0_i32_0 : i32, i32
  }
  func.func @transform_7(%arg0: i32) -> (i32, i32) {
    %c0_i32 = arith.constant 0 : i32
    %c0_i32_0 = arith.constant 0 : i32
    %c0_i32_1 = arith.constant 0 : i32
    return %c0_i32, %c0_i32_0 : i32, i32
  }
  func.func @transform_8(%arg0: i32) -> (i32, i32) {
    %c0_i32 = arith.constant 0 : i32
    %c0_i32_0 = arith.constant 0 : i32
    %c0_i32_1 = arith.constant 0 : i32
    return %c0_i32, %c0_i32_0 : i32, i32
  }
  func.func @transform_9(%arg0: i32) -> (i32, i32) {
    %c0_i32 = arith.constant 0 : i32
    %c0_i32_0 = arith.constant 0 : i32
    %c0_i32_1 = arith.constant 0 : i32
    return %c0_i32, %c0_i32_0 : i32, i32
  }
  func.func @transform_10(%arg0: i32) -> (i32, i32) {
    %c0_i32 = arith.constant 0 : i32
    %c0_i32_0 = arith.constant 0 : i32
    %c0_i32_1 = arith.constant 0 : i32
    return %c0_i32, %c0_i32_0 : i32, i32
  }
  func.func @transform_11(%arg0: i32) -> (i32, i32) {
    %c0_i32 = arith.constant 0 : i32
    %c0_i32_0 = arith.constant 0 : i32
    %c0_i32_1 = arith.constant 0 : i32
    return %c0_i32, %c0_i32_0 : i32, i32
  }
  func.func @transform_12(%arg0: i32) -> (i32, i32) {
    %c0_i32 = arith.constant 0 : i32
    %c0_i32_0 = arith.constant 0 : i32
    %c0_i32_1 = arith.constant 0 : i32
    return %c0_i32, %c0_i32_0 : i32, i32
  }
  func.func @transform_13(%arg0: i32) -> (i32, i32) {
    %c0_i32 = arith.constant 0 : i32
    %c0_i32_0 = arith.constant 0 : i32
    return %arg0, %c0_i32 : i32, i32
  }
}

</mosaic_0001>

<llo_original>
// kernel: focused_attention_net.1
$region0: #{focused_attention_net.1}
  #allocation0 [shape = 'u32[]', space=smem, size = 0x4, offset = 0x4, fixed_abs, tag = 'smem constant byte address 0x4 - core index']
  #allocation1 [shape = 'u32[144,128]{1,0:T(1,128)}', space=vmem, size = 0x12000, scoped, tag = 'internal scratch']
  #allocation2 [shape = 'f32[1,1]{1,0:T(1,128)S(1)}', space=vmem, size = 0x200, scoped, tag = 'scoped memory for focused_attention_net.1']
  %s0 = inlined_call_operand.vmem [shape: f32[8,20], index: 0, kind: input, shape index: {}]
  %s1 = inlined_call_operand.vmem [shape: bf16[20,128], index: 1, kind: input, shape index: {}]
  %s2 = inlined_call_operand.vmem [shape: f32[1,128], index: 2, kind: input, shape index: {}]
  %s3 = inlined_call_operand.vmem [shape: bf16[128,20], index: 3, kind: input, shape index: {}]
  %s4 = inlined_call_operand.vmem [shape: f32[1,20], index: 4, kind: input, shape index: {}]
  %s5 = inlined_call_operand.vmem [shape: bf16[20,256], index: 5, kind: input, shape index: {}]
  %s6 = inlined_call_operand.vmem [shape: f32[1,256], index: 6, kind: input, shape index: {}]
  %s7 = inlined_call_operand.vmem [shape: bf16[256,128], index: 7, kind: input, shape index: {}]
  %s8 = inlined_call_operand.vmem [shape: f32[1,128], index: 8, kind: input, shape index: {}]
  %s9 = inlined_call_operand.vmem [shape: bf16[128,64], index: 9, kind: input, shape index: {}]
  %s10 = inlined_call_operand.vmem [shape: f32[1,64], index: 10, kind: input, shape index: {}]
  %s11 = inlined_call_operand.vmem [shape: f32[1,64], index: 11, kind: input, shape index: {}]
  %s12 = inlined_call_operand.<no memory space> [shape: f32[1,1], index: 12, kind: input, shape index: {}]
  %s13 = inlined_call_operand.vmem [shape: f32[8,1], index: 13, kind: output, shape index: {}]
  %s14 = sld [smem:[#allocation0]]
  $region62: #{focused_attention_net.1} parent=0
    _
  %s16 = ssub.s32 1, %s14
  %s17 = scalar_select 0, %s16, %s14
  %v18 = vstv %s12
  %19 = vst [vmem:[#allocation2] sm:$0x1] %v18
  // Predicated region
  $region2: #{focused_attention_net.1} parent=0 // pred_check
    _
  $region3: #{focused_attention_net.1} parent=0 // pred_check_branch
    %21 = sbr.rel (0) target = $region5
  $region4: #{focused_attention_net.1} parent=0 // pred_region
    _
  $region5: #{focused_attention_net.1} parent=0 // pred_fallthru
    _
  // Predicated region
  $region6: #{focused_attention_net.1} parent=0 // pred_check
    _
  $region7: #{focused_attention_net.1} parent=0 // pred_check_branch
    %23 = sbr.rel (0) target = $region9
  $region8: #{focused_attention_net.1} parent=0 // pred_region
    _
  $region9: #{focused_attention_net.1} parent=0 // pred_fallthru
    _
  // Predicated region
  $region10: #{focused_attention_net.1} parent=0 // pred_check
    _
  $region11: #{focused_attention_net.1} parent=0 // pred_check_branch
    %25 = sbr.rel (0) target = $region13
  $region12: #{focused_attention_net.1} parent=0 // pred_region
    _
  $region13: #{focused_attention_net.1} parent=0 // pred_fallthru
    _
  // Predicated region
  $region14: #{focused_attention_net.1} parent=0 // pred_check
    _
  $region15: #{focused_attention_net.1} parent=0 // pred_check_branch
    %27 = sbr.rel (0) target = $region17
  $region16: #{focused_attention_net.1} parent=0 // pred_region
    _
  $region17: #{focused_attention_net.1} parent=0 // pred_fallthru
    _
  // Predicated region
  $region18: #{focused_attention_net.1} parent=0 // pred_check
    _
  $region19: #{focused_attention_net.1} parent=0 // pred_check_branch
    %29 = sbr.rel (0) target = $region21
  $region20: #{focused_attention_net.1} parent=0 // pred_region
    _
  $region21: #{focused_attention_net.1} parent=0 // pred_fallthru
    _
  // Predicated region
  $region22: #{focused_attention_net.1} parent=0 // pred_check
    _
  $region23: #{focused_attention_net.1} parent=0 // pred_check_branch
    %31 = sbr.rel (0) target = $region25
  $region24: #{focused_attention_net.1} parent=0 // pred_region
    _
  $region25: #{focused_attention_net.1} parent=0 // pred_fallthru
    _
  // Predicated region
  $region26: #{focused_attention_net.1} parent=0 // pred_check
    _
  $region27: #{focused_attention_net.1} parent=0 // pred_check_branch
    %33 = sbr.rel (0) target = $region29
  $region28: #{focused_attention_net.1} parent=0 // pred_region
    _
  $region29: #{focused_attention_net.1} parent=0 // pred_fallthru
    _
  // Predicated region
  $region30: #{focused_attention_net.1} parent=0 // pred_check
    _
  $region31: #{focused_attention_net.1} parent=0 // pred_check_branch
    %35 = sbr.rel (0) target = $region33
  $region32: #{focused_attention_net.1} parent=0 // pred_region
    _
  $region33: #{focused_attention_net.1} parent=0 // pred_fallthru
    _
  // Predicated region
  $region34: #{focused_attention_net.1} parent=0 // pred_check
    _
  $region35: #{focused_attention_net.1} parent=0 // pred_check_branch
    %37 = sbr.rel (0) target = $region37
  $region36: #{focused_attention_net.1} parent=0 // pred_region
    _
  $region37: #{focused_attention_net.1} parent=0 // pred_fallthru
    _
  // Predicated region
  $region38: #{focused_attention_net.1} parent=0 // pred_check
    _
  $region39: #{focused_attention_net.1} parent=0 // pred_check_branch
    %39 = sbr.rel (0) target = $region41
  $region40: #{focused_attention_net.1} parent=0 // pred_region
    _
  $region41: #{focused_attention_net.1} parent=0 // pred_fallthru
    _
  // Predicated region
  $region42: #{focused_attention_net.1} parent=0 // pred_check
    _
  $region43: #{focused_attention_net.1} parent=0 // pred_check_branch
    %41 = sbr.rel (0) target = $region45
  $region44: #{focused_attention_net.1} parent=0 // pred_region
    _
  $region45: #{focused_attention_net.1} parent=0 // pred_fallthru
    _
  // Predicated region
  $region46: #{focused_attention_net.1} parent=0 // pred_check
    _
  $region47: #{focused_attention_net.1} parent=0 // pred_check_branch
    %43 = sbr.rel (0) target = $region49
  $region48: #{focused_attention_net.1} parent=0 // pred_region
    _
  $region49: #{focused_attention_net.1} parent=0 // pred_fallthru
    _
  // Predicated region
  $region50: #{focused_attention_net.1} parent=0 // pred_check
    _
  $region51: #{focused_attention_net.1} parent=0 // pred_check_branch
    %45 = sbr.rel (0) target = $region53
  $region52: #{focused_attention_net.1} parent=0 // pred_region
    _
  $region53: #{focused_attention_net.1} parent=0 // pred_fallthru
    _
  %v47 = vld [vmem:[%s0] sm:$0xff]
  %v48 = vpack.c.bf16 %v47, %v47
  %v49 = vld [vmem:[%s1] sm:$0xf]
  %v50 = vld [vmem:[%s1 + $0x4] sm:$0xf]
  %v51 = vld [vmem:[%s1 + $0x8] sm:$0x3]
  %v52 = vld [vmem:[%s2] sm:$0x1]
  %v54 = vlaneseq
  %v55 = vshrl.u32 %v54, 7
  %v56 = vsub.s32 0, %v55
  %v57 = vrot.slane %v52, %v56
  %v62 = vunpack.c.l.b16 %v49
  %v63 = vunpack.c.l.b16 %v50
  %v64 = vunpack.c.l.b16 %v51
  %v65 = vpack.c.b16 %v63, %v62
  %v66 = vpack.c.b16 %v64, %v64
  %vm68 = vcmask 162816
  %v70 = vsel %vm68, %v48, 0
  %vm72 = vcmask 1041408
  %v74 = vsel %vm72, %v66, 0
  %76 = vmatprep.subr.bf16.mxu0 0
  %77 = vmatpush1.bf16.msra.mxu0 %v65
  %78 = vmatprep.subr.bf16.mxu0 0
  %79 = vmatpush1.bf16.msra.mxu0 %v74
  %80 = vmatprep.subr.bf16.mxu0 0
  %81 = vmatpush1.bf16.msra.mxu0 0
  %82 = vmatprep.subr.bf16.mxu0 0
  %83 = vmatpush1.bf16.msra.mxu0 0
  %84 = vmatprep.subr.bf16.mxu0 0
  %85 = vmatpush1.bf16.msra.mxu0 0
  %86 = vmatprep.subr.bf16.mxu0 0
  %87 = vmatpush1.bf16.msra.mxu0 0
  %88 = vmatprep.subr.bf16.mxu0 0
  %89 = vmatpush1.bf16.msra.mxu0 0
  %90 = vmatprep.subr.bf16.mxu0 0
  %91 = vmatpush1.bf16.msra.mxu0 0
  %92 = vmatprep.subr.bf16.mxu0 0
  %93 = vmatpush1.bf16.msra.mxu0 0
  %94 = vmatprep.subr.bf16.mxu0 0
  %95 = vmatpush1.bf16.msra.mxu0 0
  %96 = vmatprep.subr.bf16.mxu0 0
  %97 = vmatpush1.bf16.msra.mxu0 0
  %98 = vmatprep.subr.bf16.mxu0 0
  %99 = vmatpush1.bf16.msra.mxu0 0
  %100 = vmatprep.subr.bf16.mxu0 0
  %101 = vmatpush1.bf16.msra.mxu0 0
  %102 = vmatprep.subr.bf16.mxu0 0
  %103 = vmatpush1.bf16.msra.mxu0 0
  %104 = vmatprep.subr.bf16.mxu0 0
  %105 = vmatpush1.bf16.msra.mxu0 0
  %106 = vmatprep.subr.bf16.mxu0 0
  %107 = vmatpush1.bf16.msra.mxu0 0
  %108 = vmatprep.mubr.bf16.mxu0 0
  %109 = vmatmul.mubr.bf16.gmra.mrb[0].mxu0 %v70
  %v110 = vpop.f32.mrb[0].mxu0
  %v111 = vadd.f32 %v57, %v110
  %v112 = vpop.f32.mrb[0].mxu0
  %v113 = vpop.f32.mrb[0].mxu0
  %v114 = vpop.f32.mrb[0].mxu0
  %115 = vdwg.mxu0
  %v116 = vtanh.pop %v111
  %v117 = vpack.c.bf16 %v116, %v116
  %v118 = vld [vmem:[%s3] sm:$0xf]
  %v119 = vld [vmem:[%s3 + $0x4] sm:$0xf]
  %v120 = vld [vmem:[%s3 + $0x8] sm:$0xf]
  %v121 = vld [vmem:[%s3 + $0xc] sm:$0xf]
  %v122 = vld [vmem:[%s3 + $0x10] sm:$0xf]
  %v123 = vld [vmem:[%s3 + $0x14] sm:$0xf]
  %v124 = vld [vmem:[%s3 + $0x18] sm:$0xf]
  %v125 = vld [vmem:[%s3 + $0x1c] sm:$0xf]
  %v126 = vld [vmem:[%s3 + $0x20] sm:$0xf]
  %v127 = vld [vmem:[%s3 + $0x24] sm:$0xf]
  %v128 = vld [vmem:[%s3 + $0x28] sm:$0xf]
  %v129 = vld [vmem:[%s3 + $0x2c] sm:$0xf]
  %v130 = vld [vmem:[%s3 + $0x30] sm:$0xf]
  %v131 = vld [vmem:[%s3 + $0x34] sm:$0xf]
  %v132 = vld [vmem:[%s3 + $0x38] sm:$0xf]
  %v133 = vld [vmem:[%s3 + $0x3c] sm:$0xf]
  %v134 = vld [vmem:[%s4] sm:$0x1]
  %v136 = vlaneseq
  %v137 = vshrl.u32 %v136, 7
  %v138 = vsub.s32 0, %v137
  %v139 = vrot.slane %v134, %v138
  %v157 = vunpack.c.l.b16 %v118
  %v158 = vunpack.c.l.b16 %v119
  %v159 = vunpack.c.l.b16 %v120
  %v160 = vunpack.c.l.b16 %v121
  %v161 = vunpack.c.l.b16 %v122
  %v162 = vunpack.c.l.b16 %v123
  %v163 = vunpack.c.l.b16 %v124
  %v164 = vunpack.c.l.b16 %v125
  %v165 = vunpack.c.l.b16 %v126
  %v166 = vunpack.c.l.b16 %v127
  %v167 = vunpack.c.l.b16 %v128
  %v168 = vunpack.c.l.b16 %v129
  %v169 = vunpack.c.l.b16 %v130
  %v170 = vunpack.c.l.b16 %v131
  %v171 = vunpack.c.l.b16 %v132
  %v172 = vunpack.c.l.b16 %v133
  %v173 = vpack.c.b16 %v158, %v157
  %v174 = vpack.c.b16 %v160, %v159
  %v175 = vpack.c.b16 %v162, %v161
  %v176 = vpack.c.b16 %v164, %v163
  %v177 = vpack.c.b16 %v166, %v165
  %v178 = vpack.c.b16 %v168, %v167
  %v179 = vpack.c.b16 %v170, %v169
  %v180 = vpack.c.b16 %v172, %v171
  %189 = vmatprep.subr.bf16.mxu0 0
  %190 = vmatpush1.bf16.msra.mxu0 %v173
  %191 = vmatprep.subr.bf16.mxu0 0
  %192 = vmatpush1.bf16.msra.mxu0 %v174
  %193 = vmatprep.subr.bf16.mxu0 0
  %194 = vmatpush1.bf16.msra.mxu0 %v175
  %195 = vmatprep.subr.bf16.mxu0 0
  %196 = vmatpush1.bf16.msra.mxu0 %v176
  %197 = vmatprep.subr.bf16.mxu0 0
  %198 = vmatpush1.bf16.msra.mxu0 %v177
  %199 = vmatprep.subr.bf16.mxu0 0
  %200 = vmatpush1.bf16.msra.mxu0 %v178
  %201 = vmatprep.subr.bf16.mxu0 0
  %202 = vmatpush1.bf16.msra.mxu0 %v179
  %203 = vmatprep.subr.bf16.mxu0 0
  %204 = vmatpush1.bf16.msra.mxu0 %v180
  %205 = vmatprep.subr.bf16.mxu0 0
  %206 = vmatpush1.bf16.msra.mxu0 0
  %207 = vmatprep.subr.bf16.mxu0 0
  %208 = vmatpush1.bf16.msra.mxu0 0
  %209 = vmatprep.subr.bf16.mxu0 0
  %210 = vmatpush1.bf16.msra.mxu0 0
  %211 = vmatprep.subr.bf16.mxu0 0
  %212 = vmatpush1.bf16.msra.mxu0 0
  %213 = vmatprep.subr.bf16.mxu0 0
  %214 = vmatpush1.bf16.msra.mxu0 0
  %215 = vmatprep.subr.bf16.mxu0 0
  %216 = vmatpush1.bf16.msra.mxu0 0
  %217 = vmatprep.subr.bf16.mxu0 0
  %218 = vmatpush1.bf16.msra.mxu0 0
  %219 = vmatprep.subr.bf16.mxu0 0
  %220 = vmatpush1.bf16.msra.mxu0 0
  %221 = vmatprep.mubr.bf16.mxu0 0
  %222 = vmatmul.mubr.bf16.gmra.mrb[0].mxu0 %v117
  %v223 = vpop.f32.mrb[0].mxu0
  %v224 = vadd.f32 %v139, %v223
  %v225 = vpop.f32.mrb[0].mxu0
  %v226 = vpop.f32.mrb[0].mxu0
  %v227 = vpop.f32.mrb[0].mxu0
  %228 = vdwg.mxu0
  %v229 = vsel %vm68, %v224, -inf
  %230 = vmax.xlane.f32.xlu0 %v229
  %v231 = vpop.xlane.xlu0 %230
  %v232 = vsub.f32 %v224, %v231
  %v233 = vmul.f32 %v232, 1.442695
  %v234 = vpow.pop %v233
  %v235 = vsel %vm68, %v234, 0.0
  %236 = vadd.xlane.f32.xlu0 %v235
  %v237 = vpop.xlane.xlu0 %236
  %v238 = vrcp.pop %v237
  %v239 = vmul.f32 %v234, %v238
  %v240 = vmul.f32 %v47, %v239
  %v241 = vpack.c.bf16 %v240, %v240
  %v242 = vld [vmem:[%s5] sm:$0xff]
  %v243 = vld [vmem:[%s5 + $0x8] sm:$0xff]
  %v244 = vld [vmem:[%s5 + $0x10] sm:$0x33]
  %v245 = vld [vmem:[%s6] sm:$0x3]
  %v247 = vlaneseq
  %v248 = vshrl.u32 %v247, 7
  %v249 = vsub.s32 0, %v248
  %v250 = vrot.slane %v245, %v249
  %v251 = vlaneseq
  %v252 = vshrl.u32 %v251, 7
  %v253 = vsub.s32 1, %v252
  %v254 = vrot.slane %v245, %v253
  %v260 = vunpack.c.l.b16 %v242
  %v261 = vunpack.c.h.b16 %v242
  %v262 = vunpack.c.l.b16 %v243
  %v263 = vunpack.c.h.b16 %v243
  %v264 = vunpack.c.l.b16 %v244
  %v265 = vunpack.c.h.b16 %v244
  %v266 = vpack.c.b16 %v262, %v260
  %v267 = vpack.c.b16 %v263, %v261
  %v268 = vpack.c.b16 %v264, %v264
  %v269 = vpack.c.b16 %v265, %v265
  %v273 = vsel %vm68, %v241, 0
  %v276 = vsel %vm72, %v268, 0
  %v279 = vsel %vm72, %v269, 0
  %281 = vmatprep.subr.bf16.mxu0 %v267
  %282 = vmatpush1.bf16.msra.mxu0 %v266
  %283 = vmatprep.subr.bf16.mxu0 %v279
  %284 = vmatpush1.bf16.msra.mxu0 %v276
  %285 = vmatprep.subr.bf16.mxu0 0
  %286 = vmatpush1.bf16.msra.mxu0 0
  %287 = vmatprep.subr.bf16.mxu0 0
  %288 = vmatpush1.bf16.msra.mxu0 0
  %289 = vmatprep.subr.bf16.mxu0 0
  %290 = vmatpush1.bf16.msra.mxu0 0
  %291 = vmatprep.subr.bf16.mxu0 0
  %292 = vmatpush1.bf16.msra.mxu0 0
  %293 = vmatprep.subr.bf16.mxu0 0
  %294 = vmatpush1.bf16.msra.mxu0 0
  %295 = vmatprep.subr.bf16.mxu0 0
  %296 = vmatpush1.bf16.msra.mxu0 0
  %297 = vmatprep.subr.bf16.mxu0 0
  %298 = vmatpush1.bf16.msra.mxu0 0
  %299 = vmatprep.subr.bf16.mxu0 0
  %300 = vmatpush1.bf16.msra.mxu0 0
  %301 = vmatprep.subr.bf16.mxu0 0
  %302 = vmatpush1.bf16.msra.mxu0 0
  %303 = vmatprep.subr.bf16.mxu0 0
  %304 = vmatpush1.bf16.msra.mxu0 0
  %305 = vmatprep.subr.bf16.mxu0 0
  %306 = vmatpush1.bf16.msra.mxu0 0
  %307 = vmatprep.subr.bf16.mxu0 0
  %308 = vmatpush1.bf16.msra.mxu0 0
  %309 = vmatprep.subr.bf16.mxu0 0
  %310 = vmatpush1.bf16.msra.mxu0 0
  %311 = vmatprep.subr.bf16.mxu0 0
  %312 = vmatpush1.bf16.msra.mxu0 0
  %313 = vmatprep.mubr.bf16.mxu0 0
  %314 = vmatmul.mubr.bf16.gmra.mrb[0].mxu0 %v273
  %v315 = vpop.f32.mrb[0].mxu0
  %v316 = vadd.f32 %v250, %v315
  %v317 = vpop.f32.mrb[0].mxu0
  %v318 = vadd.f32 %v254, %v317
  %v319 = vpop.f32.mrb[0].mxu0
  %v320 = vpop.f32.mrb[0].mxu0
  %321 = vdwg.mxu0
  %v322 = vmax.f32 %v316, 0.0
  %v323 = vmax.f32 %v318, 0.0
  %v324 = vpack.c.bf16 %v322, %v322
  %v325 = vpack.c.bf16 %v323, %v323
  %v326 = vld [vmem:[%s7] sm:$0xf]
  %v327 = vld [vmem:[%s7 + $0x4] sm:$0xf]
  %v328 = vld [vmem:[%s7 + $0x8] sm:$0xf]
  %v329 = vld [vmem:[%s7 + $0xc] sm:$0xf]
  %v330 = vld [vmem:[%s7 + $0x10] sm:$0xf]
  %v331 = vld [vmem:[%s7 + $0x14] sm:$0xf]
  %v332 = vld [vmem:[%s7 + $0x18] sm:$0xf]
  %v333 = vld [vmem:[%s7 + $0x1c] sm:$0xf]
  %v334 = vld [vmem:[%s7 + $0x20] sm:$0xf]
  %v335 = vld [vmem:[%s7 + $0x24] sm:$0xf]
  %v336 = vld [vmem:[%s7 + $0x28] sm:$0xf]
  %v337 = vld [vmem:[%s7 + $0x2c] sm:$0xf]
  %v338 = vld [vmem:[%s7 + $0x30] sm:$0xf]
  %v339 = vld [vmem:[%s7 + $0x34] sm:$0xf]
  %v340 = vld [vmem:[%s7 + $0x38] sm:$0xf]
  %v341 = vld [vmem:[%s7 + $0x3c] sm:$0xf]
  %v342 = vld [vmem:[%s7 + $0x40] sm:$0xf]
  %v343 = vld [vmem:[%s7 + $0x44] sm:$0xf]
  %v344 = vld [vmem:[%s7 + $0x48] sm:$0xf]
  %v345 = vld [vmem:[%s7 + $0x4c] sm:$0xf]
  %v346 = vld [vmem:[%s7 + $0x50] sm:$0xf]
  %v347 = vld [vmem:[%s7 + $0x54] sm:$0xf]
  %v348 = vld [vmem:[%s7 + $0x58] sm:$0xf]
  %v349 = vld [vmem:[%s7 + $0x5c] sm:$0xf]
  %v350 = vld [vmem:[%s7 + $0x60] sm:$0xf]
  %v351 = vld [vmem:[%s7 + $0x64] sm:$0xf]
  %v352 = vld [vmem:[%s7 + $0x68] sm:$0xf]
  %v353 = vld [vmem:[%s7 + $0x6c] sm:$0xf]
  %v354 = vld [vmem:[%s7 + $0x70] sm:$0xf]
  %v355 = vld [vmem:[%s7 + $0x74] sm:$0xf]
  %v356 = vld [vmem:[%s7 + $0x78] sm:$0xf]
  %v357 = vld [vmem:[%s7 + $0x7c] sm:$0xf]
  %v358 = vld [vmem:[%s8] sm:$0x1]
  %v360 = vlaneseq
  %v361 = vshrl.u32 %v360, 7
  %v362 = vsub.s32 0, %v361
  %v363 = vrot.slane %v358, %v362
  %v397 = vunpack.c.l.b16 %v326
  %v398 = vunpack.c.l.b16 %v327
  %v399 = vunpack.c.l.b16 %v328
  %v400 = vunpack.c.l.b16 %v329
  %v401 = vunpack.c.l.b16 %v330
  %v402 = vunpack.c.l.b16 %v331
  %v403 = vunpack.c.l.b16 %v332
  %v404 = vunpack.c.l.b16 %v333
  %v405 = vunpack.c.l.b16 %v334
  %v406 = vunpack.c.l.b16 %v335
  %v407 = vunpack.c.l.b16 %v336
  %v408 = vunpack.c.l.b16 %v337
  %v409 = vunpack.c.l.b16 %v338
  %v410 = vunpack.c.l.b16 %v339
  %v411 = vunpack.c.l.b16 %v340
  %v412 = vunpack.c.l.b16 %v341
  %v413 = vunpack.c.l.b16 %v342
  %v414 = vunpack.c.l.b16 %v343
  %v415 = vunpack.c.l.b16 %v344
  %v416 = vunpack.c.l.b16 %v345
  %v417 = vunpack.c.l.b16 %v346
  %v418 = vunpack.c.l.b16 %v347
  %v419 = vunpack.c.l.b16 %v348
  %v420 = vunpack.c.l.b16 %v349
  %v421 = vunpack.c.l.b16 %v350
  %v422 = vunpack.c.l.b16 %v351
  %v423 = vunpack.c.l.b16 %v352
  %v424 = vunpack.c.l.b16 %v353
  %v425 = vunpack.c.l.b16 %v354
  %v426 = vunpack.c.l.b16 %v355
  %v427 = vunpack.c.l.b16 %v356
  %v428 = vunpack.c.l.b16 %v357
  %v429 = vpack.c.b16 %v398, %v397
  %v430 = vpack.c.b16 %v400, %v399
  %v431 = vpack.c.b16 %v402, %v401
  %v432 = vpack.c.b16 %v404, %v403
  %v433 = vpack.c.b16 %v406, %v405
  %v434 = vpack.c.b16 %v408, %v407
  %v435 = vpack.c.b16 %v410, %v409
  %v436 = vpack.c.b16 %v412, %v411
  %v437 = vpack.c.b16 %v414, %v413
  %v438 = vpack.c.b16 %v416, %v415
  %v439 = vpack.c.b16 %v418, %v417
  %v440 = vpack.c.b16 %v420, %v419
  %v441 = vpack.c.b16 %v422, %v421
  %v442 = vpack.c.b16 %v424, %v423
  %v443 = vpack.c.b16 %v426, %v425
  %v444 = vpack.c.b16 %v428, %v427
  %461 = vmatprep.subr.bf16.mxu0 0
  %462 = vmatpush1.bf16.msra.mxu0 %v429
  %463 = vmatprep.subr.bf16.mxu0 0
  %464 = vmatpush1.bf16.msra.mxu0 %v430
  %465 = vmatprep.subr.bf16.mxu0 0
  %466 = vmatpush1.bf16.msra.mxu0 %v431
  %467 = vmatprep.subr.bf16.mxu0 0
  %468 = vmatpush1.bf16.msra.mxu0 %v432
  %469 = vmatprep.subr.bf16.mxu0 0
  %470 = vmatpush1.bf16.msra.mxu0 %v433
  %471 = vmatprep.subr.bf16.mxu0 0
  %472 = vmatpush1.bf16.msra.mxu0 %v434
  %473 = vmatprep.subr.bf16.mxu0 0
  %474 = vmatpush1.bf16.msra.mxu0 %v435
  %475 = vmatprep.subr.bf16.mxu0 0
  %476 = vmatpush1.bf16.msra.mxu0 %v436
  %477 = vmatprep.subr.bf16.mxu0 0
  %478 = vmatpush1.bf16.msra.mxu0 %v437
  %479 = vmatprep.subr.bf16.mxu0 0
  %480 = vmatpush1.bf16.msra.mxu0 %v438
  %481 = vmatprep.subr.bf16.mxu0 0
  %482 = vmatpush1.bf16.msra.mxu0 %v439
  %483 = vmatprep.subr.bf16.mxu0 0
  %484 = vmatpush1.bf16.msra.mxu0 %v440
  %485 = vmatprep.subr.bf16.mxu0 0
  %486 = vmatpush1.bf16.msra.mxu0 %v441
  %487 = vmatprep.subr.bf16.mxu0 0
  %488 = vmatpush1.bf16.msra.mxu0 %v442
  %489 = vmatprep.subr.bf16.mxu0 0
  %490 = vmatpush1.bf16.msra.mxu0 %v443
  %491 = vmatprep.subr.bf16.mxu0 0
  %492 = vmatpush1.bf16.msra.mxu0 %v444
  %493 = vmatprep.mubr.bf16.mxu0 %v325
  %494 = vmatmul.mubr.bf16.gmra.mrb[0].mxu0 %v324
  %v495 = vpop.f32.mrb[0].mxu0
  %v496 = vadd.f32 %v363, %v495
  %v497 = vpop.f32.mrb[0].mxu0
  %v498 = vpop.f32.mrb[0].mxu0
  %v499 = vpop.f32.mrb[0].mxu0
  %500 = vdwg.mxu0
  %v501 = vmax.f32 %v496, 0.0
  %v502 = vpack.c.bf16 %v501, %v501
  %v503 = vld [vmem:[%s9] sm:$0xf]
  %v504 = vld [vmem:[%s9 + $0x4] sm:$0xf]
  %v505 = vld [vmem:[%s9 + $0x8] sm:$0xf]
  %v506 = vld [vmem:[%s9 + $0xc] sm:$0xf]
  %v507 = vld [vmem:[%s9 + $0x10] sm:$0xf]
  %v508 = vld [vmem:[%s9 + $0x14] sm:$0xf]
  %v509 = vld [vmem:[%s9 + $0x18] sm:$0xf]
  %v510 = vld [vmem:[%s9 + $0x1c] sm:$0xf]
  %v511 = vld [vmem:[%s9 + $0x20] sm:$0xf]
  %v512 = vld [vmem:[%s9 + $0x24] sm:$0xf]
  %v513 = vld [vmem:[%s9 + $0x28] sm:$0xf]
  %v514 = vld [vmem:[%s9 + $0x2c] sm:$0xf]
  %v515 = vld [vmem:[%s9 + $0x30] sm:$0xf]
  %v516 = vld [vmem:[%s9 + $0x34] sm:$0xf]
  %v517 = vld [vmem:[%s9 + $0x38] sm:$0xf]
  %v518 = vld [vmem:[%s9 + $0x3c] sm:$0xf]
  %v519 = vld [vmem:[%s10] sm:$0x1]
  %v521 = vlaneseq
  %v522 = vshrl.u32 %v521, 7
  %v523 = vsub.s32 0, %v522
  %v524 = vrot.slane %v519, %v523
  %v542 = vunpack.c.l.b16 %v503
  %v543 = vunpack.c.l.b16 %v504
  %v544 = vunpack.c.l.b16 %v505
  %v545 = vunpack.c.l.b16 %v506
  %v546 = vunpack.c.l.b16 %v507
  %v547 = vunpack.c.l.b16 %v508
  %v548 = vunpack.c.l.b16 %v509
  %v549 = vunpack.c.l.b16 %v510
  %v550 = vunpack.c.l.b16 %v511
  %v551 = vunpack.c.l.b16 %v512
  %v552 = vunpack.c.l.b16 %v513
  %v553 = vunpack.c.l.b16 %v514
  %v554 = vunpack.c.l.b16 %v515
  %v555 = vunpack.c.l.b16 %v516
  %v556 = vunpack.c.l.b16 %v517
  %v557 = vunpack.c.l.b16 %v518
  %v558 = vpack.c.b16 %v543, %v542
  %v559 = vpack.c.b16 %v545, %v544
  %v560 = vpack.c.b16 %v547, %v546
  %v561 = vpack.c.b16 %v549, %v548
  %v562 = vpack.c.b16 %v551, %v550
  %v563 = vpack.c.b16 %v553, %v552
  %v564 = vpack.c.b16 %v555, %v554
  %v565 = vpack.c.b16 %v557, %v556
  %574 = vmatprep.subr.bf16.mxu0 0
  %575 = vmatpush1.bf16.msra.mxu0 %v558
  %576 = vmatprep.subr.bf16.mxu0 0
  %577 = vmatpush1.bf16.msra.mxu0 %v559
  %578 = vmatprep.subr.bf16.mxu0 0
  %579 = vmatpush1.bf16.msra.mxu0 %v560
  %580 = vmatprep.subr.bf16.mxu0 0
  %581 = vmatpush1.bf16.msra.mxu0 %v561
  %582 = vmatprep.subr.bf16.mxu0 0
  %583 = vmatpush1.bf16.msra.mxu0 %v562
  %584 = vmatprep.subr.bf16.mxu0 0
  %585 = vmatpush1.bf16.msra.mxu0 %v563
  %586 = vmatprep.subr.bf16.mxu0 0
  %587 = vmatpush1.bf16.msra.mxu0 %v564
  %588 = vmatprep.subr.bf16.mxu0 0
  %589 = vmatpush1.bf16.msra.mxu0 %v565
  %590 = vmatprep.subr.bf16.mxu0 0
  %591 = vmatpush1.bf16.msra.mxu0 0
  %592 = vmatprep.subr.bf16.mxu0 0
  %593 = vmatpush1.bf16.msra.mxu0 0
  %594 = vmatprep.subr.bf16.mxu0 0
  %595 = vmatpush1.bf16.msra.mxu0 0
  %596 = vmatprep.subr.bf16.mxu0 0
  %597 = vmatpush1.bf16.msra.mxu0 0
  %598 = vmatprep.subr.bf16.mxu0 0
  %599 = vmatpush1.bf16.msra.mxu0 0
  %600 = vmatprep.subr.bf16.mxu0 0
  %601 = vmatpush1.bf16.msra.mxu0 0
  %602 = vmatprep.subr.bf16.mxu0 0
  %603 = vmatpush1.bf16.msra.mxu0 0
  %604 = vmatprep.subr.bf16.mxu0 0
  %605 = vmatpush1.bf16.msra.mxu0 0
  %606 = vmatprep.mubr.bf16.mxu0 0
  %607 = vmatmul.mubr.bf16.gmra.mrb[0].mxu0 %v502
  %v608 = vpop.f32.mrb[0].mxu0
  %v609 = vadd.f32 %v524, %v608
  %v610 = vpop.f32.mrb[0].mxu0
  %v611 = vpop.f32.mrb[0].mxu0
  %v612 = vpop.f32.mrb[0].mxu0
  %613 = vdwg.mxu0
  %v614 = vmax.f32 %v609, 0.0
  %v615 = vld [vmem:[%s11] sm:$0x1]
  %v617 = vlaneseq
  %v618 = vshrl.u32 %v617, 7
  %v619 = vsub.s32 0, %v618
  %v620 = vrot.slane %v615, %v619
  %v622 = vmul.f32 %v614, %v620
  %vm623 = vcmask 523264
  %v624 = vsel %vm623, %v622, 0.0
  %625 = vadd.xlane.f32.xlu0 %v624
  %v626 = vpop.xlane.xlu0 %625
  %v627 = vld [vmem:[#allocation2] sm:$0x1]
  %v629 = vlaneseq
  %v630 = vshrl.u32 %v629, 7
  %v631 = vsub.s32 0, %v630
  %v632 = vrot.slane %v627, %v631
  %v634 = vadd.f32 %v626, %v632
  %vm635 = vcmask 7168
  %636 = vst.msk [vmem:[%s13] sm:$0xff] %vm635, %v634
  // Predicated region
  $region54: #{focused_attention_net.1} parent=0 // pred_check
    _
  $region55: #{focused_attention_net.1} parent=0 // pred_check_branch
    %638 = sbr.rel (0) target = $region57
  $region56: #{focused_attention_net.1} parent=0 // pred_region
    _
  $region57: #{focused_attention_net.1} parent=0 // pred_fallthru
    _
  // Predicated region
  $region58: #{focused_attention_net.1} parent=0 // pred_check
    _
  $region59: #{focused_attention_net.1} parent=0 // pred_check_branch
    %640 = sbr.rel (0) target = $region61
  $region60: #{focused_attention_net.1} parent=0 // pred_region
    _
  $region61: #{focused_attention_net.1} parent=0 // pred_fallthru
    _

</llo_original>
